<compile_context>
chip_gen: v6e
topology: v6e:2x2x1
jax: 0.10.0
libtpu: 0.0.40
codegen_flags: <defaults>
</compile_context>

<pallas_src>
import functools
import math

import jax
import jax.numpy as jnp
from jax.experimental import pallas as pl
from jax.experimental.pallas import tpu as pltpu


_DEFAULT_MAX_BLOCK_BYTES = 1 * 1024 * 1024  # logical bytes per block (pre-padding)


def _copy_kernel(x_ref, o_ref):
    # Fast path: the permutation is fully expressed by the grid/index_maps.
    o_ref[...] = x_ref[...]


def _divisors(n):
    return [d for d in range(1, n + 1) if n % d == 0]


def _padded_block_bytes(sized_dims, itemsize):
    """Rough VMEM footprint of one buffer after (8,128) tiling/padding."""
    dims = [int(d) for d in sized_dims]
    if not dims:
        return itemsize
    lane = -(-dims[-1] // 128) * 128
    sub = -(-dims[-2] // 8) * 8 if len(dims) >= 2 else 8
    lead = 1
    for d in dims[:-2]:
        lead *= d
    return itemsize * lead * sub * lane


@functools.lru_cache(maxsize=None)
def _build_permute_call(shape, dtype_name, perm, max_block_bytes):
    ndim = len(shape)
    dtype = jnp.dtype(dtype_name)
    itemsize = dtype.itemsize
    out_shape = tuple(shape[p] for p in perm)
    inv_perm = [0] * ndim
    for j, p in enumerate(perm):
        inv_perm[p] = j

    # ---- axes that must stay resident inside every block -------------------
    # input trailing axes (source sublane/lane) + the input axes that become
    # the output trailing axes (dest sublane/lane).
    resident = sorted({ndim - 2, ndim - 1, perm[-2], perm[-1]})
    squeezed_axes = [d for d in range(ndim) if d not in resident]

    # ---- tile resident axes until the block fits the byte budget -----------
    block_len = {d: shape[d] for d in resident}

    def _block_bytes():
        n = itemsize
        for v in block_len.values():
            n *= v
        return n

    def _required_multiple(d):
        # A tile along `d` must keep both the input view and the output view
        # legal: lane axes need multiples of 128, sublane axes multiples of 8
        # (full extent is always legal, but tiles here are strictly smaller).
        if d == ndim - 1 or d == perm[-1]:
            return 128
        if d == ndim - 2 or d == perm[-2]:
            return 8
        return 1

    if _block_bytes() > max_block_bytes:
        # Prefer tiling non-lane axes first (keeps lanes dense), outermost in
        # the output first (write locality for the output-major grid).
        lane_axes = {ndim - 1, perm[-1]}
        candidates = sorted(resident, key=lambda d: (d in lane_axes, inv_perm[d]))
        for d in candidates:
            if _block_bytes() <= max_block_bytes:
                break
            req = _required_multiple(d)
            valid = [t for t in _divisors(shape[d]) if t % req == 0 and t < shape[d]]
            if not valid:
                continue
            per_other = itemsize
            for a in resident:
                if a != d:
                    per_other *= block_len[a]
            fitting = [t for t in valid if per_other * t <= max_block_bytes]
            block_len[d] = max(fitting) if fitting else min(valid)

    tiled_axes = [d for d in resident if block_len[d] < shape[d]]

    # ---- grid: one axis per squeezed outer axis + each tiled resident axis --
    grid_in_axes = sorted(squeezed_axes + tiled_axes, key=lambda d: inv_perm[d])
    grid = tuple(
        shape[d] if d in squeezed_axes else shape[d] // block_len[d]
        for d in grid_in_axes
    )
    grid_pos = {d: i for i, d in enumerate(grid_in_axes)}
    if not grid:
        grid = (1,)  # degenerate: single block covering the whole array

    # ---- BlockSpecs ---------------------------------------------------------
    in_block = tuple(
        pl.Squeezed() if d in squeezed_axes else block_len[d] for d in range(ndim)
    )
    out_block = tuple(
        pl.Squeezed() if perm[j] in squeezed_axes else block_len[perm[j]]
        for j in range(ndim)
    )

    def in_index_map(*gids):
        return tuple(gids[grid_pos[d]] if d in grid_pos else 0 for d in range(ndim))

    def out_index_map(*gids):
        return tuple(
            gids[grid_pos[perm[j]]] if perm[j] in grid_pos else 0 for j in range(ndim)
        )

    # ---- minimal in-kernel permutation of the resident (sized) axes --------
    out_block_srcs = [perm[j] for j in range(ndim) if perm[j] in resident]
    sigma = tuple(resident.index(s) for s in out_block_srcs)

    if sigma == tuple(range(len(sigma))):
        kernel = _copy_kernel  # pure DMA remap, zero on-chip compute
    else:
        def kernel(x_ref, o_ref, _sigma=sigma):
            o_ref[...] = jnp.transpose(x_ref[...], _sigma)

    # ---- explicit VMEM budget (in + out, double-buffered, padded) ----------
    in_sized = [block_len[d] for d in resident]
    out_sized = [block_len[s] for s in out_block_srcs]
    need = 2 * (_padded_block_bytes(in_sized, itemsize)
                + _padded_block_bytes(out_sized, itemsize)) + (2 << 20)
    vmem_limit = int(min(max(need, 32 * 1024 * 1024), 64 * 1024 * 1024))

    call = pl.pallas_call(
        kernel,
        out_shape=jax.ShapeDtypeStruct(out_shape, dtype),
        grid_spec=pltpu.PrefetchScalarGridSpec(
            num_scalar_prefetch=0,
            grid=grid,
            in_specs=[pl.BlockSpec(in_block, in_index_map)],
            out_specs=pl.BlockSpec(out_block, out_index_map),
        ),
        compiler_params=pltpu.CompilerParams(
            dimension_semantics=("parallel",) * len(grid),
            vmem_limit_bytes=vmem_limit,
        ),
    )
    return jax.jit(call)


def permute_pallas(x, permutation, *, max_block_bytes=_DEFAULT_MAX_BLOCK_BYTES):
    """Pallas equivalent of torch.Tensor.permute(*permutation)."""
    ndim = x.ndim
    if ndim == 0:
        return x
    perm0 = tuple(int(p) % ndim for p in permutation)
    if len(perm0) != ndim or sorted(perm0) != list(range(ndim)):
        raise ValueError(f"invalid permutation {permutation} for rank {ndim}")
    out_shape = tuple(int(x.shape[p]) for p in perm0)
    if ndim == 1 or perm0 == tuple(range(ndim)):
        return x  # identity: nothing to move
    if 0 in x.shape:
        return jnp.reshape(x, out_shape)  # empty tensor: pure metadata change

    shape = tuple(int(s) for s in x.shape)
    perm = perm0

    # 1) Drop size-1 axes (moving a unit axis is just a reshape).
    keep = [d for d in range(ndim) if shape[d] != 1]
    if len(keep) != ndim:
        remap = {d: i for i, d in enumerate(keep)}
        perm = tuple(remap[p] for p in perm if p in remap)
        shape = tuple(shape[d] for d in keep)
    if len(shape) <= 1 or perm == tuple(range(len(shape))):
        return jnp.reshape(x, out_shape)

    # 2) Coalesce maximal runs of input axes that stay adjacent in the output
    #    (makes the lane axis as wide as possible; contiguous reshape is free).
    runs = [[perm[0]]]
    for p in perm[1:]:
        if p == runs[-1][-1] + 1:
            runs[-1].append(p)
        else:
            runs.append([p])
    runs_in = sorted(runs, key=lambda r: r[0])
    c_shape = tuple(int(math.prod(shape[r[0]:r[-1] + 1])) for r in runs_in)
    start_to_idx = {r[0]: i for i, r in enumerate(runs_in)}
    c_perm = tuple(start_to_idx[r[0]] for r in runs)
    if len(c_shape) <= 1 or c_perm == tuple(range(len(c_shape))):
        return jnp.reshape(x, out_shape)

    xr = x if c_shape == tuple(int(s) for s in x.shape) else jnp.reshape(x, c_shape)
    fn = _build_permute_call(c_shape, jnp.dtype(x.dtype).name, c_perm,
                             int(max_block_bytes))
    y = fn(xr)
    return y if tuple(y.shape) == out_shape else jnp.reshape(y, out_shape)


class PermutePallas:
    """Mirror of the PyTorch `Permute` nn.Module."""

    def __init__(self, permutation):
        self.permutation = tuple(permutation)

    def __call__(self, x, permutation=None):
        if permutation is None:
            return permute_pallas(x, self.permutation)
        return permute_pallas(x, permutation)


if __name__ == "__main__":
    key = jax.random.PRNGKey(0)
    k1, k2, k3, k4, k5 = jax.random.split(key, 5)

    # NCHW input matching the module demo: batch=2, channels=4, spatial=16x16.
    x = jax.random.normal(key, (2, 4, 16, 16), dtype=jnp.float32)

    mod = PermutePallas((0, 2, 3, 1))  # NCHW -> NHWC
    y = jax.block_until_ready(mod(x))
    ref = jnp.transpose(x, (0, 2, 3, 1))
    assert y.shape == ref.shape and y.dtype == ref.dtype
    assert jnp.array_equal(y, ref), "mismatch: NCHW->NHWC"

    # Runtime-permutation override path of forward().
    y2 = jax.block_until_ready(mod(x, permutation=(1, 0, 3, 2)))
    assert jnp.array_equal(y2, jnp.transpose(x, (1, 0, 3, 2))), "mismatch: (1,0,3,2)"

    # Trailing axes keep their relative order -> coalesced, lane-dense path.
    y3 = jax.block_until_ready(mod(x, permutation=(1, 0, 2, 3)))
    assert jnp.array_equal(y3, jnp.transpose(x, (1, 0, 2, 3))), "mismatch: coalesced"

    # Exercise multi-axis resident tiling (block byte budget forces tiles).
    xb = jax.random.normal(k1, (2, 8, 32, 128), dtype=jnp.float32)
    y4 = jax.block_until_ready(
        permute_pallas(xb, (0, 2, 3, 1), max_block_bytes=32 * 1024))
    assert jnp.array_equal(y4, jnp.transpose(xb, (0, 2, 3, 1))), "mismatch: tiled"

    # Rank-3 and rank-2 trailing transposes.
    x3 = jax.random.normal(k2, (4, 32, 128), dtype=jnp.float32)
    y5 = jax.block_until_ready(permute_pallas(x3, (0, 2, 1)))
    assert jnp.array_equal(y5, jnp.transpose(x3, (0, 2, 1))), "mismatch: rank-3"

    x2d = jax.random.normal(k3, (32, 128), dtype=jnp.float32)
    y6 = jax.block_until_ready(permute_pallas(x2d, (1, 0)))
    assert jnp.array_equal(y6, jnp.transpose(x2d)), "mismatch: rank-2"

    # Larger 2-D transpose: both axes get 128-aligned tiles (stays off VMEM OOM).
    x2b = jax.random.normal(k4, (256, 512), dtype=jnp.float32)
    y7 = jax.block_until_ready(
        permute_pallas(x2b, (1, 0), max_block_bytes=64 * 1024))
    assert jnp.array_equal(y7, jnp.transpose(x2b)), "mismatch: tiled 2-D"

    # Size-1 axis moved to the lane position -> reduces to a pure reshape.
    x1 = jax.random.normal(k5, (2, 1, 16, 16), dtype=jnp.float32)
    y8 = jax.block_until_ready(permute_pallas(x1, (0, 2, 3, 1)))
    assert jnp.array_equal(y8, jnp.transpose(x1, (0, 2, 3, 1))), "mismatch: unit axis"

    print("KERNEL_OK")
</pallas_src>

<mosaic_0001>
module attributes {stable_mosaic.version = 11 : i64} {
  func.func @kernel(%arg0: i32, %arg1: memref<1x4x256xf32, #tpu.memory_space<vmem>>, %arg2: memref<1x256x4xf32, #tpu.memory_space<vmem>>) attributes {dimension_semantics = [#tpu.dimension_semantics<parallel>], iteration_bounds = array<i64: 2>, scalar_prefetch = 0 : i64, scratch_operands = 0 : i64, tpu.core_type = #tpu.core_type<tc>, window_params = [{transform_indices = @transform_0, window_bounds = array<i64: 1, 4, 256>}, {transform_indices = @transform_1, window_bounds = array<i64: 1, 256, 4>}]} {
    %c0 = arith.constant 0 : index
    %c0_0 = arith.constant 0 : index
    %c0_1 = arith.constant 0 : index
    %0 = vector.load %arg1[%c0, %c0_0, %c0_1] : memref<1x4x256xf32, #tpu.memory_space<vmem>>, vector<1x4x256xf32>
    %1 = vector.shape_cast %0 : vector<1x4x256xf32> to vector<4x256xf32>
    %2 = tpu.transpose %1, [1, 0] : vector<4x256xf32> -> vector<256x4xf32>
    %c0_2 = arith.constant 0 : index
    %c0_3 = arith.constant 0 : index
    %c0_4 = arith.constant 0 : index
    %3 = vector.load %arg2[%c0_2, %c0_3, %c0_4] : memref<1x256x4xf32, #tpu.memory_space<vmem>>, vector<1x256x4xf32>
    %4 = vector.shape_cast %3 : vector<1x256x4xf32> to vector<256x4xf32>
    %5 = vector.shape_cast %2 : vector<256x4xf32> to vector<1x256x4xf32>
    tpu.vector_store %arg2[%c0_2, %c0_3, %c0_4], %5 {strides = array<i32>} : memref<1x256x4xf32, #tpu.memory_space<vmem>>, vector<1x256x4xf32>,
    return
  }
  func.func @transform_0(%arg0: i32) -> (i32, i32, i32) {
    %c0_i32 = arith.constant 0 : i32
    %c0_i32_0 = arith.constant 0 : i32
    %c0_i32_1 = arith.constant 0 : i32
    return %arg0, %c0_i32, %c0_i32_0 : i32, i32, i32
  }
  func.func @transform_1(%arg0: i32) -> (i32, i32, i32) {
    %c0_i32 = arith.constant 0 : i32
    %c0_i32_0 = arith.constant 0 : i32
    %c0_i32_1 = arith.constant 0 : i32
    return %arg0, %c0_i32, %c0_i32_0 : i32, i32, i32
  }
}

</mosaic_0001>

<llo_original>
// kernel: tpu_custom_call.1
$region0: #{tpu_custom_call.1}
  #allocation0 [shape = 'u32[]', space=smem, size = 0x4, offset = 0x4, fixed_abs, tag = 'smem constant byte address 0x4 - core index']
  #allocation1 [shape = 'u32[144,128]{1,0:T(1,128)}', space=vmem, size = 0x12000, scoped, tag = 'internal scratch']
  %s0 = inlined_call_operand.hbm [shape: f32[2,4,256], index: 0, kind: input, shape index: {}]
  %s1 = inlined_call_operand.vmem [shape: f32[2,256,4], index: 1, kind: output, shape index: {}]
  %s2 = sld [smem:[#allocation0]]
  $region41: #{tpu_custom_call.1} parent=0
    _
  %s4 = ssub.s32 1, %s2
  %s5 = scalar_select 0, %s4, %s2
  $region1: #{tpu_custom_call.1} parent=0
    #allocation2 [shape = 'u8[8192]{0}', space=vmem, size = 0x2000, scoped, tag = 'input window, operand 0']
    #allocation3 [shape = 's32[2]{0}', space=sflag, size = 0x8, scoped, tag = 'scoped memory for tpu_custom_call.1']
    %6 = vsyncpa [#allocation3], 0
    %s7 = scalar_lea.sflag [#allocation3], 1
    %8 = vsyncpa %s7, 0
    loop: start=0, step=1, limit=4
    $region2: #{tpu_custom_call.1} parent=1 // loop_pre_header
      _
    $region3: #{tpu_custom_call.1} parent=1 // loop_header
      %s10 = sphi 0, %s14
      %p11 = scmp.ge.s32.totalorder %s10, 4
      %s20 = sphi 0, %s22
      %s23 = sphi 0, %s20
      %s24 = sphi 0, %s23
      %s40 = sphi 0, %s24
      %s46 = sphi 0, %s48
      %s49 = sphi 0, %s46
      %s50 = sphi 0, %s49
      %s66 = sphi 0, %s50
    $region4: #{tpu_custom_call.1} parent=1 // loop_header_branch
      %13 = sbr.rel (%p11) target = $region8
    $region5: #{tpu_custom_call.1} parent=1 // loop_body
      %s15 = ssub.s32 %s10, 1
      %s16 = ssub.s32 %s10, 2
      %s17 = sadd.s32 %s10, 1
      %s18 = ssub.s32 %s10, %s17
      %p19 = scmp.eq.s32.totalorder %s18, 0
      %s21 = sadd.s32 %s20, 1
      %s22 = scalar_select %p19, %s20, %s21
      %p25 = pneg %p19
      %p26 = scmp.eq.s32.totalorder %s10, 1
      %p27 = por %p25, %p26
      %p28 = scmp.ne.s32.totalorder %s20, %s23
      %p29 = scmp.eq.s32.totalorder %s10, 0
      %p30 = por %p28, %p29
      %p31 = scmp.ne.s32.totalorder %s20, %s23
      %p32 = scmp.eq.s32.totalorder %s15, 1
      %p33 = por %p31, %p32
      %p34 = scmp.ne.s32.totalorder %s23, %s24
      %p35 = scmp.eq.s32.totalorder %s15, 0
      %p36 = por %p34, %p35
      %p37 = scmp.ne.s32.totalorder %s23, %s24
      %p38 = scmp.eq.s32.totalorder %s16, 1
      %p39 = por %p37, %p38
      %p41 = scmp.ne.s32.totalorder %s24, %s40
      %p42 = scmp.eq.s32.totalorder %s16, 0
      %p43 = por %p41, %p42
      %s44 = ssub.s32 %s10, %s17
      %p45 = scmp.eq.s32.totalorder %s44, 0
      %s47 = sadd.s32 %s46, 1
      %s48 = scalar_select %p45, %s46, %s47
      %p51 = pneg %p45
      %p52 = scmp.eq.s32.totalorder %s10, 1
      %p53 = por %p51, %p52
      %p54 = scmp.ne.s32.totalorder %s46, %s49
      %p55 = scmp.eq.s32.totalorder %s10, 0
      %p56 = por %p54, %p55
      %p57 = scmp.ne.s32.totalorder %s46, %s49
      %p58 = scmp.eq.s32.totalorder %s15, 1
      %p59 = por %p57, %p58
      %p60 = scmp.ne.s32.totalorder %s49, %s50
      %p61 = scmp.eq.s32.totalorder %s15, 0
      %p62 = por %p60, %p61
      %p63 = scmp.ne.s32.totalorder %s49, %s50
      %p64 = scmp.eq.s32.totalorder %s16, 1
      %p65 = por %p63, %p64
      %p67 = scmp.ne.s32.totalorder %s50, %s66
      %p68 = scmp.eq.s32.totalorder %s16, 0
      %p69 = por %p67, %p68
      %p70 = scmp.le.s32.totalorder 1, %s10
      %p71 = scmp.lt.s32.totalorder %s10, 3
      %p72 = pnand %p70, %p71
      %p73 = pneg %p72
      // Predicated region
      $region9: #{tpu_custom_call.1} parent=5 // pred_check
        _
      $region10: #{tpu_custom_call.1} parent=5 // pred_check_branch
        %75 = sbr.rel (%p72) target = $region12
      $region11: #{tpu_custom_call.1} parent=5 // pred_region
        %s76 = ssub.s32 %s10, 1
      $region12: #{tpu_custom_call.1} parent=5 // pred_fallthru
        _
      %p77 = scmp.lt.s32.totalorder %s10, 2
      // Predicated region
      $region13: #{tpu_custom_call.1} parent=5 // pred_check
        %p78 = pneg %p77
      $region14: #{tpu_custom_call.1} parent=5 // pred_check_branch
        %80 = sbr.rel (%p78) target = $region16
      $region15: #{tpu_custom_call.1} parent=5 // pred_region
        // Predicated region
        $region17: #{tpu_custom_call.1} parent=15 // pred_check
          %p81 = pneg %p30
        $region18: #{tpu_custom_call.1} parent=15 // pred_check_branch
          %83 = sbr.rel (%p81) target = $region20
        $region19: #{tpu_custom_call.1} parent=15 // pred_region
          %s84 = sand.u32 %s20, 1
          %s85 = scalar_lea.sflag [#allocation3], %s84
          %s86 = sand.u32 %s20, 1
          %s87 = smul.addr %s86, 8
          %s88 = scalar_lea.vmem [#allocation2], %s87
          %s90 = ssub.s32 128, 128
          %91 = vsyncadd %s85, %s90
          %s92 = smul.addr %s10, 2
          %s93 = smul.addr %s92, 64
          %s94 = scalar_lea.hbm %s0, %s93
          %s96 = sshll.u32 %s88, 4
          %s97 = int_to_ptr.vmem [resolvable:$true] %s96
          %99 = dma.hbm_to_vmem [thread:$0]  %s94, 128, %s97, %s85
        $region20: #{tpu_custom_call.1} parent=15 // pred_fallthru
          _
      $region16: #{tpu_custom_call.1} parent=5 // pred_fallthru
        _
      %p100 = scmp.le.s32.totalorder 1, %s10
      %p101 = scmp.lt.s32.totalorder %s10, 3
      %p102 = pnand %p100, %p101
      %p103 = pneg %p102
      // Predicated region
      $region21: #{tpu_custom_call.1} parent=5 // pred_check
        _
      $region22: #{tpu_custom_call.1} parent=5 // pred_check_branch
        %105 = sbr.rel (%p102) target = $region24
      $region23: #{tpu_custom_call.1} parent=5 // pred_region
        %s106 = ssub.s32 %s10, 1
        %s107 = sand.u32 %s23, 1
        %s108 = scalar_lea.sflag [#allocation3], %s107
        %s109 = sand.u32 %s23, 1
        %s110 = smul.addr %s109, 8
        %s111 = scalar_lea.vmem [#allocation2], %s110
        // Predicated region
        $region25: #{tpu_custom_call.1} parent=23 // pred_check
          %p112 = pneg %p36
        $region26: #{tpu_custom_call.1} parent=23 // pred_check_branch
          %114 = sbr.rel (%p112) target = $region28
        $region27: #{tpu_custom_call.1} parent=23 // pred_region
          %115 = dma.done %s108, 128
        $region28: #{tpu_custom_call.1} parent=23 // pred_fallthru
          _
        %s116 = sand.u32 %s23, 1
        %s117 = scalar_lea.sflag [#allocation3], %s116
        %s118 = sand.u32 %s23, 1
        %s119 = smul.addr %s118, 8
        %s120 = scalar_lea.vmem [#allocation2], %s119
        %p121 = pneg %p36
        %p122 = pneg %p33
        %p123 = pneg %p62
        %p124 = pneg %p59
        %p125 = scmp.lt.s32.totalorder %s15, 1
        %s126 = scalar_select %p125, %s15, 1
        %s127 = smul.addr %s126, 32
        %s128 = smul.addr %s127, 8
        %s129 = scalar_lea.vmem %s1, %s128
        %p130 = scmp.lt.s32.totalorder %s15, 1
        %s131 = scalar_select %p130, %s15, 1
        %s132 = smul.addr %s131, 32
        %s133 = smul.addr %s132, 8
        %s134 = scalar_lea.vmem %s1, %s133
        %v135 = vld [vmem:[%s111] sm:$0xff]
        %v137 = vcombine.high %v135, %v135
        %139 = vxpose.xlu0.b32.start [1/16] %v135, 128
        %140 = vxpose.xlu0.b32.cont [2/16] 0.0, 128
        %141 = vxpose.xlu0.b32.cont [3/16] 0.0, 128
        %142 = vxpose.xlu0.b32.cont [4/16] 0.0, 128
        %143 = vxpose.xlu0.b32.cont [5/16] 0.0, 128
        %144 = vxpose.xlu0.b32.cont [6/16] 0.0, 128
        %145 = vxpose.xlu0.b32.cont [7/16] 0.0, 128
        %146 = vxpose.xlu0.b32.cont [8/16] 0.0, 128
        %147 = vxpose.xlu0.b32.cont [9/16] 0.0, 128
        %148 = vxpose.xlu0.b32.cont [10/16] 0.0, 128
        %149 = vxpose.xlu0.b32.cont [11/16] 0.0, 128
        %150 = vxpose.xlu0.b32.cont [12/16] 0.0, 128
        %151 = vxpose.xlu0.b32.cont [13/16] 0.0, 128
        %152 = vxpose.xlu0.b32.cont [14/16] 0.0, 128
        %153 = vxpose.xlu0.b32.cont [15/16] 0.0, 128
        %154 = vxpose.xlu0.b32.end [16/16] 0.0, 128
        %v155 = vpop.trf.xlu0
        %v156 = vpop.trf.xlu0
        %v157 = vpop.trf.xlu0
        %v158 = vpop.trf.xlu0
        %v159 = vpop.trf.xlu0
        %v160 = vpop.trf.xlu0
        %v161 = vpop.trf.xlu0
        %v162 = vpop.trf.xlu0
        %v163 = vpop.trf.xlu0
        %v164 = vpop.trf.xlu0
        %v165 = vpop.trf.xlu0
        %v166 = vpop.trf.xlu0
        %v167 = vpop.trf.xlu0
        %v168 = vpop.trf.xlu0
        %v169 = vpop.trf.xlu0
        %v170 = vpop.trf.xlu0
        %171 = vxpose.xlu0.b32.start [1/16] %v137, 128
        %172 = vxpose.xlu0.b32.cont [2/16] 0.0, 128
        %173 = vxpose.xlu0.b32.cont [3/16] 0.0, 128
        %174 = vxpose.xlu0.b32.cont [4/16] 0.0, 128
        %175 = vxpose.xlu0.b32.cont [5/16] 0.0, 128
        %176 = vxpose.xlu0.b32.cont [6/16] 0.0, 128
        %177 = vxpose.xlu0.b32.cont [7/16] 0.0, 128
        %178 = vxpose.xlu0.b32.cont [8/16] 0.0, 128
        %179 = vxpose.xlu0.b32.cont [9/16] 0.0, 128
        %180 = vxpose.xlu0.b32.cont [10/16] 0.0, 128
        %181 = vxpose.xlu0.b32.cont [11/16] 0.0, 128
        %182 = vxpose.xlu0.b32.cont [12/16] 0.0, 128
        %183 = vxpose.xlu0.b32.cont [13/16] 0.0, 128
        %184 = vxpose.xlu0.b32.cont [14/16] 0.0, 128
        %185 = vxpose.xlu0.b32.cont [15/16] 0.0, 128
        %186 = vxpose.xlu0.b32.end [16/16] 0.0, 128
        %v187 = vpop.trf.xlu0
        %v188 = vpop.trf.xlu0
        %v189 = vpop.trf.xlu0
        %v190 = vpop.trf.xlu0
        %v191 = vpop.trf.xlu0
        %v192 = vpop.trf.xlu0
        %v193 = vpop.trf.xlu0
        %v194 = vpop.trf.xlu0
        %v195 = vpop.trf.xlu0
        %v196 = vpop.trf.xlu0
        %v197 = vpop.trf.xlu0
        %v198 = vpop.trf.xlu0
        %v199 = vpop.trf.xlu0
        %v200 = vpop.trf.xlu0
        %v201 = vpop.trf.xlu0
        %v202 = vpop.trf.xlu0
        %vm203 = vcmask 31744
        %204 = vst.msk [vmem:[%s134] sm:$0xff] %vm203, %v155
        %205 = vst.msk [vmem:[%s134 + $0x8] sm:$0xff] %vm203, %v156
        %206 = vst.msk [vmem:[%s134 + $0x10] sm:$0xff] %vm203, %v157
        %207 = vst.msk [vmem:[%s134 + $0x18] sm:$0xff] %vm203, %v158
        %208 = vst.msk [vmem:[%s134 + $0x20] sm:$0xff] %vm203, %v159
        %209 = vst.msk [vmem:[%s134 + $0x28] sm:$0xff] %vm203, %v160
        %210 = vst.msk [vmem:[%s134 + $0x30] sm:$0xff] %vm203, %v161
        %211 = vst.msk [vmem:[%s134 + $0x38] sm:$0xff] %vm203, %v162
        %212 = vst.msk [vmem:[%s134 + $0x40] sm:$0xff] %vm203, %v163
        %213 = vst.msk [vmem:[%s134 + $0x48] sm:$0xff] %vm203, %v164
        %214 = vst.msk [vmem:[%s134 + $0x50] sm:$0xff] %vm203, %v165
        %215 = vst.msk [vmem:[%s134 + $0x58] sm:$0xff] %vm203, %v166
        %216 = vst.msk [vmem:[%s134 + $0x60] sm:$0xff] %vm203, %v167
        %217 = vst.msk [vmem:[%s134 + $0x68] sm:$0xff] %vm203, %v168
        %218 = vst.msk [vmem:[%s134 + $0x70] sm:$0xff] %vm203, %v169
        %219 = vst.msk [vmem:[%s134 + $0x78] sm:$0xff] %vm203, %v170
        %220 = vst.msk [vmem:[%s134 + $0x80] sm:$0xff] %vm203, %v187
        %221 = vst.msk [vmem:[%s134 + $0x88] sm:$0xff] %vm203, %v188
        %222 = vst.msk [vmem:[%s134 + $0x90] sm:$0xff] %vm203, %v189
        %223 = vst.msk [vmem:[%s134 + $0x98] sm:$0xff] %vm203, %v190
        %224 = vst.msk [vmem:[%s134 + $0xa0] sm:$0xff] %vm203, %v191
        %225 = vst.msk [vmem:[%s134 + $0xa8] sm:$0xff] %vm203, %v192
        %226 = vst.msk [vmem:[%s134 + $0xb0] sm:$0xff] %vm203, %v193
        %227 = vst.msk [vmem:[%s134 + $0xb8] sm:$0xff] %vm203, %v194
        %228 = vst.msk [vmem:[%s134 + $0xc0] sm:$0xff] %vm203, %v195
        %229 = vst.msk [vmem:[%s134 + $0xc8] sm:$0xff] %vm203, %v196
        %230 = vst.msk [vmem:[%s134 + $0xd0] sm:$0xff] %vm203, %v197
        %231 = vst.msk [vmem:[%s134 + $0xd8] sm:$0xff] %vm203, %v198
        %232 = vst.msk [vmem:[%s134 + $0xe0] sm:$0xff] %vm203, %v199
        %233 = vst.msk [vmem:[%s134 + $0xe8] sm:$0xff] %vm203, %v200
        %234 = vst.msk [vmem:[%s134 + $0xf0] sm:$0xff] %vm203, %v201
        %235 = vst.msk [vmem:[%s134 + $0xf8] sm:$0xff] %vm203, %v202
        %p236 = scmp.lt.s32.totalorder %s15, 1
        %s237 = scalar_select %p236, %s15, 1
        %s238 = smul.addr %s237, 32
        %s239 = smul.addr %s238, 8
        %s240 = scalar_lea.vmem %s1, %s239
        // Predicated region
        $region29: #{tpu_custom_call.1} parent=23 // pred_check
          %p241 = pneg %p59
        $region30: #{tpu_custom_call.1} parent=23 // pred_check_branch
          %243 = sbr.rel (%p241) target = $region32
        $region31: #{tpu_custom_call.1} parent=23 // pred_region
          _
        $region32: #{tpu_custom_call.1} parent=23 // pred_fallthru
          _
      $region24: #{tpu_custom_call.1} parent=5 // pred_fallthru
        _
      %p244 = scmp.le.s32.totalorder 2, %s10
      // Predicated region
      $region33: #{tpu_custom_call.1} parent=5 // pred_check
        %p245 = pneg %p244
      $region34: #{tpu_custom_call.1} parent=5 // pred_check_branch
        %247 = sbr.rel (%p245) target = $region36
      $region35: #{tpu_custom_call.1} parent=5 // pred_region
        %s248 = ssub.s32 %s10, 2
        // Predicated region
        $region37: #{tpu_custom_call.1} parent=35 // pred_check
          %p249 = pneg %p65
        $region38: #{tpu_custom_call.1} parent=35 // pred_check_branch
          %251 = sbr.rel (%p249) target = $region40
        $region39: #{tpu_custom_call.1} parent=35 // pred_region
          %p252 = scmp.lt.s32.totalorder %s16, 1
          %s253 = scalar_select %p252, %s16, 1
          %s254 = smul.addr %s253, 32
          %s255 = smul.addr %s254, 8
          %s256 = scalar_lea.vmem %s1, %s255
        $region40: #{tpu_custom_call.1} parent=35 // pred_fallthru
          _
      $region36: #{tpu_custom_call.1} parent=5 // pred_fallthru
        _
    $region6: #{tpu_custom_call.1} parent=1 // loop_footer
      %s14 = sadd.s32 1, %s10
    $region7: #{tpu_custom_call.1} parent=1 // loop_footer_branch
      %9 = sbr.rel target = $region3
    $region8: #{tpu_custom_call.1} parent=1 // loop_exit
      _
    %257 = vsyncpa [#allocation3], 1
    %s258 = scalar_lea.sflag [#allocation3], 1
    %259 = vsyncpa %s258, 1

</llo_original>
